<compile_context>
chip_gen: v6e
topology: v6e:2x2x1
jax: 0.10.0
libtpu: 0.0.40
codegen_flags: <defaults>
</compile_context>

<pallas_src>
import jax
import jax.numpy as jnp
from jax.experimental import pallas as pl
from jax.experimental.pallas import tpu as pltpu

IMAGE_WIDTH = 28
INPUT_SIZE = IMAGE_WIDTH * IMAGE_WIDTH   # 784
HIDDEN_SIZE = 100
OUTPUT_SIZE = 10

HIDDEN_PAD = 128   # lane-aligned hidden width
OUTPUT_PAD = 128   # lane-aligned compute width for layer 2 (store is narrow)
TB_DEFAULT = 2048  # batch tile (multiple of 8); ~16 MiB VMEM estimate
TB_MAX = 4096      # keep large-tile sweeps inside v7x's 64 MiB VMEM


def _round_up(n, m):
    return ((n + m - 1) // m) * m


def _mlp_kernel(x_ref, w1_ref, b1_ref, w2_ref, b2_ref, o_ref):
    # Hidden layer: (TB,784) @ (784,128) + (1,128) -> sigmoid (f32 MXU accumulate)
    h = jnp.dot(x_ref[...], w1_ref[...], preferred_element_type=jnp.float32)
    h = jax.nn.sigmoid(h + b1_ref[...])
    # Output layer: (TB,128) @ (128,128) + (1,128) -> sigmoid
    y = jnp.dot(h, w2_ref[...], preferred_element_type=jnp.float32)
    y = jax.nn.sigmoid(y + b2_ref[...])
    # Store only the real 10 output columns (narrow, masked vst; tiny cost).
    o_ref[...] = y[:, :OUTPUT_SIZE].astype(o_ref.dtype)


def prepare_params(w1, b1, w2, b2):
    """One-time lane-padding of weights/biases (hoisted off the hot path).

    w1: (784, 100), b1: (1, 100), w2: (100, 10), b2: (1, 10)  -- torch-transposed.
    """
    w1p = jnp.pad(w1.astype(jnp.float32),
                  ((0, 0), (0, HIDDEN_PAD - HIDDEN_SIZE)))
    b1p = jnp.pad(b1.astype(jnp.float32).reshape(1, HIDDEN_SIZE),
                  ((0, 0), (0, HIDDEN_PAD - HIDDEN_SIZE)))
    # Padded rows of w2p MUST stay zero: they null the sigmoid(0)=0.5 padded
    # hidden columns.  Padded output columns are never stored.
    w2p = jnp.pad(w2.astype(jnp.float32),
                  ((0, HIDDEN_PAD - HIDDEN_SIZE), (0, OUTPUT_PAD - OUTPUT_SIZE)))
    b2p = jnp.pad(b2.astype(jnp.float32).reshape(1, OUTPUT_SIZE),
                  ((0, 0), (0, OUTPUT_PAD - OUTPUT_SIZE)))
    return w1p, b1p, w2p, b2p


def net_forward(x, params, *, tb=TB_DEFAULT):
    """Forward pass of Net.

    x:      anything that reshapes row-major to (B, 784) (e.g. NCHW (B,1,28,28)).
    params: output of prepare_params(w1, b1, w2, b2).
    Returns (B, 10) float32.
    """
    w1p, b1p, w2p, b2p = params
    x2d = x.reshape(-1, INPUT_SIZE).astype(jnp.float32)
    batch = x2d.shape[0]

    # Batch tile: multiple of 8, no larger than needed, capped for v7x VMEM.
    tb = max(8, min(tb, _round_up(batch, 8), TB_MAX))
    tb = _round_up(tb, 8)
    grid = (pl.cdiv(batch, tb),)   # ragged last block handled by Pallas masking

    # Rough VMEM need: double-buffered x + out tiles, resident weights,
    # plus headroom for the (tb, 128) hidden intermediate.
    vmem_need = 4 * (2 * tb * INPUT_SIZE
                     + 2 * tb * OUTPUT_SIZE
                     + 2 * tb * HIDDEN_PAD
                     + 2 * (INPUT_SIZE * HIDDEN_PAD + HIDDEN_PAD
                            + HIDDEN_PAD * OUTPUT_PAD + OUTPUT_PAD))
    vmem_limit = None
    if vmem_need > (28 << 20):
        # Raise above the default scoped limit, but stay well inside v7x's 64 MiB.
        vmem_limit = min(vmem_need + (8 << 20), 56 << 20)

    out = pl.pallas_call(
        _mlp_kernel,
        out_shape=jax.ShapeDtypeStruct((batch, OUTPUT_SIZE), jnp.float32),
        grid_spec=pltpu.PrefetchScalarGridSpec(
            num_scalar_prefetch=0,
            grid=grid,
            in_specs=[
                # x streamed per batch tile (auto double-buffered HBM->VMEM DMA)
                pl.BlockSpec((tb, INPUT_SIZE), lambda i: (i, 0)),
                # weights / biases resident in VMEM across all grid steps
                pl.BlockSpec((INPUT_SIZE, HIDDEN_PAD), lambda i: (0, 0)),
                pl.BlockSpec((1, HIDDEN_PAD), lambda i: (0, 0)),
                pl.BlockSpec((HIDDEN_PAD, OUTPUT_PAD), lambda i: (0, 0)),
                pl.BlockSpec((1, OUTPUT_PAD), lambda i: (0, 0)),
            ],
            # Narrow output: full last dim (10) is a legal block width.
            out_specs=pl.BlockSpec((tb, OUTPUT_SIZE), lambda i: (i, 0)),
        ),
        compiler_params=pltpu.CompilerParams(
            dimension_semantics=("parallel",),   # megacore sharding of batch axis
            vmem_limit_bytes=vmem_limit,
        ),
    )(x2d, w1p, b1p, w2p, b2p)

    return out


def init_params(key):
    """Deterministic init mimicking torch.nn.Linear (uniform +-1/sqrt(fan_in))."""
    k1, k2, k3, k4 = jax.random.split(key, 4)
    bound1 = 1.0 / jnp.sqrt(INPUT_SIZE)
    bound2 = 1.0 / jnp.sqrt(HIDDEN_SIZE)
    w1 = jax.random.uniform(k1, (INPUT_SIZE, HIDDEN_SIZE), jnp.float32, -bound1, bound1)
    b1 = jax.random.uniform(k2, (1, HIDDEN_SIZE), jnp.float32, -bound1, bound1)
    w2 = jax.random.uniform(k3, (HIDDEN_SIZE, OUTPUT_SIZE), jnp.float32, -bound2, bound2)
    b2 = jax.random.uniform(k4, (1, OUTPUT_SIZE), jnp.float32, -bound2, bound2)
    return w1, b1, w2, b2


def _ref(x, w1, b1, w2, b2):
    x2d = x.reshape(-1, INPUT_SIZE).astype(jnp.float32)
    return jax.nn.sigmoid(jax.nn.sigmoid(x2d @ w1 + b1) @ w2 + b2)


if __name__ == "__main__":
    key = jax.random.PRNGKey(0)
    pkey, xkey1, xkey2 = jax.random.split(key, 3)
    w1, b1, w2, b2 = init_params(pkey)
    params = prepare_params(w1, b1, w2, b2)   # padded once, off the hot path

    # Primary check: small MNIST-like batch, NCHW (2, 1, 28, 28)
    x_small = jax.random.normal(xkey1, (2, 1, IMAGE_WIDTH, IMAGE_WIDTH), jnp.float32)
    y_small = net_forward(x_small, params)
    jax.block_until_ready(y_small)
    assert y_small.shape == (2, OUTPUT_SIZE)
    assert jnp.allclose(y_small, _ref(x_small, w1, b1, w2, b2), atol=1e-5), \
        "mismatch vs reference (small batch)"

    # Secondary check: ragged batch + multiple grid steps (tb=32, batch=90,
    # last block partial -> exercises masked boundary load/store).
    x_big = jax.random.normal(xkey2, (90, 1, IMAGE_WIDTH, IMAGE_WIDTH), jnp.float32)
    y_big = net_forward(x_big, params, tb=32)
    jax.block_until_ready(y_big)
    assert y_big.shape == (90, OUTPUT_SIZE)
    assert jnp.allclose(y_big, _ref(x_big, w1, b1, w2, b2), atol=1e-5), \
        "mismatch vs reference (ragged tiled batch)"

    print("KERNEL_OK")
</pallas_src>

<mosaic_0001>
module attributes {stable_mosaic.version = 11 : i64} {
  func.func @_mlp_kernel(%arg0: i32, %arg1: memref<8x784xf32, #tpu.memory_space<vmem>>, %arg2: memref<784x128xf32, #tpu.memory_space<vmem>>, %arg3: memref<1x128xf32, #tpu.memory_space<vmem>>, %arg4: memref<128x128xf32, #tpu.memory_space<vmem>>, %arg5: memref<1x128xf32, #tpu.memory_space<vmem>>, %arg6: memref<8x10xf32, #tpu.memory_space<vmem>>) attributes {dimension_semantics = [#tpu.dimension_semantics<parallel>], iteration_bounds = array<i64: 1>, scalar_prefetch = 0 : i64, scratch_operands = 0 : i64, tpu.core_type = #tpu.core_type<tc>, window_params = [{transform_indices = @transform_0, window_bounds = array<i64: 8, 784>}, {pipeline_mode = #tpu.pipeline_mode<synchronous>, transform_indices = @transform_1, window_bounds = array<i64: 784, 128>}, {pipeline_mode = #tpu.pipeline_mode<synchronous>, transform_indices = @transform_2, window_bounds = array<i64: 1, 128>}, {pipeline_mode = #tpu.pipeline_mode<synchronous>, transform_indices = @transform_3, window_bounds = array<i64: 128, 128>}, {pipeline_mode = #tpu.pipeline_mode<synchronous>, transform_indices = @transform_4, window_bounds = array<i64: 1, 128>}, {transform_indices = @transform_5, window_bounds = array<i64: 8, 10>}]} {
    %c0 = arith.constant 0 : index
    %c0_0 = arith.constant 0 : index
    %0 = vector.load %arg1[%c0, %c0_0] : memref<8x784xf32, #tpu.memory_space<vmem>>, vector<8x784xf32>
    %c0_1 = arith.constant 0 : index
    %c0_2 = arith.constant 0 : index
    %1 = vector.load %arg2[%c0_1, %c0_2] : memref<784x128xf32, #tpu.memory_space<vmem>>, vector<784x128xf32>
    %cst = arith.constant dense<0.000000e+00> : vector<8x128xf32>
    %2 = tpu.matmul %0, %1, %cst {dimension_numbers = #tpu.dot_dimension_numbers<[1], [0], [0], [1], [0, 0, 1, 1], [], []>} : vector<8x784xf32>, vector<784x128xf32>, vector<8x128xf32> -> vector<8x128xf32>
    %c0_3 = arith.constant 0 : index
    %c0_4 = arith.constant 0 : index
    %3 = vector.load %arg3[%c0_3, %c0_4] : memref<1x128xf32, #tpu.memory_space<vmem>>, vector<1x128xf32>
    %4 = vector.broadcast %3 : vector<1x128xf32> to vector<8x128xf32>
    %5 = arith.addf %2, %4 : vector<8x128xf32>
    %6 = arith.negf %5 : vector<8x128xf32>
    %7 = math.exp %6 : vector<8x128xf32>
    %cst_5 = arith.constant 1.000000e+00 : f32
    %8 = vector.broadcast %cst_5 : f32 to vector<8x128xf32>
    %9 = arith.addf %8, %7 : vector<8x128xf32>
    %10 = arith.divf %8, %9 : vector<8x128xf32>
    %c0_6 = arith.constant 0 : index
    %c0_7 = arith.constant 0 : index
    %11 = vector.load %arg4[%c0_6, %c0_7] : memref<128x128xf32, #tpu.memory_space<vmem>>, vector<128x128xf32>
    %cst_8 = arith.constant dense<0.000000e+00> : vector<8x128xf32>
    %12 = tpu.matmul %10, %11, %cst_8 {dimension_numbers = #tpu.dot_dimension_numbers<[1], [0], [0], [1], [0, 0, 1, 1], [], []>} : vector<8x128xf32>, vector<128x128xf32>, vector<8x128xf32> -> vector<8x128xf32>
    %c0_9 = arith.constant 0 : index
    %c0_10 = arith.constant 0 : index
    %13 = vector.load %arg5[%c0_9, %c0_10] : memref<1x128xf32, #tpu.memory_space<vmem>>, vector<1x128xf32>
    %14 = vector.broadcast %13 : vector<1x128xf32> to vector<8x128xf32>
    %15 = arith.addf %12, %14 : vector<8x128xf32>
    %16 = arith.negf %15 : vector<8x128xf32>
    %17 = math.exp %16 : vector<8x128xf32>
    %cst_11 = arith.constant 1.000000e+00 : f32
    %18 = vector.broadcast %cst_11 : f32 to vector<8x128xf32>
    %19 = arith.addf %18, %17 : vector<8x128xf32>
    %20 = arith.divf %18, %19 : vector<8x128xf32>
    %21 = vector.extract_strided_slice %20 {offsets = [0, 0], sizes = [8, 10], strides = [1, 1]} : vector<8x128xf32> to vector<8x10xf32>
    %c0_12 = arith.constant 0 : index
    %c0_13 = arith.constant 0 : index
    %22 = vector.load %arg6[%c0_12, %c0_13] : memref<8x10xf32, #tpu.memory_space<vmem>>, vector<8x10xf32>
    tpu.vector_store %arg6[%c0_12, %c0_13], %21 {strides = array<i32>} : memref<8x10xf32, #tpu.memory_space<vmem>>, vector<8x10xf32>,
    return
  }
  func.func @transform_0(%arg0: i32) -> (i32, i32) {
    %c0_i32 = arith.constant 0 : i32
    %c0_i32_0 = arith.constant 0 : i32
    return %arg0, %c0_i32 : i32, i32
  }
  func.func @transform_1(%arg0: i32) -> (i32, i32) {
    %c0_i32 = arith.constant 0 : i32
    %c0_i32_0 = arith.constant 0 : i32
    %c0_i32_1 = arith.constant 0 : i32
    return %c0_i32, %c0_i32_0 : i32, i32
  }
  func.func @transform_2(%arg0: i32) -> (i32, i32) {
    %c0_i32 = arith.constant 0 : i32
    %c0_i32_0 = arith.constant 0 : i32
    %c0_i32_1 = arith.constant 0 : i32
    return %c0_i32, %c0_i32_0 : i32, i32
  }
  func.func @transform_3(%arg0: i32) -> (i32, i32) {
    %c0_i32 = arith.constant 0 : i32
    %c0_i32_0 = arith.constant 0 : i32
    %c0_i32_1 = arith.constant 0 : i32
    return %c0_i32, %c0_i32_0 : i32, i32
  }
  func.func @transform_4(%arg0: i32) -> (i32, i32) {
    %c0_i32 = arith.constant 0 : i32
    %c0_i32_0 = arith.constant 0 : i32
    %c0_i32_1 = arith.constant 0 : i32
    return %c0_i32, %c0_i32_0 : i32, i32
  }
  func.func @transform_5(%arg0: i32) -> (i32, i32) {
    %c0_i32 = arith.constant 0 : i32
    %c0_i32_0 = arith.constant 0 : i32
    return %arg0, %c0_i32 : i32, i32
  }
}

</mosaic_0001>

<llo_original>
// kernel: tpu_custom_call.1
$region0: #{tpu_custom_call.1}
  #allocation0 [shape = 'u32[]', space=smem, size = 0x4, offset = 0x4, fixed_abs, tag = 'smem constant byte address 0x4 - core index']
  #allocation1 [shape = 'u32[144,128]{1,0:T(1,128)}', space=vmem, size = 0x12000, scoped, tag = 'internal scratch']
  %s0 = inlined_call_operand.hbm [shape: f32[2,784], index: 0, kind: input, shape index: {}]
  %s1 = inlined_call_operand.hbm [shape: f32[784,128], index: 1, kind: input, shape index: {}]
  %s2 = inlined_call_operand.vmem [shape: f32[1,128], index: 2, kind: input, shape index: {}]
  %s3 = inlined_call_operand.hbm [shape: f32[128,128], index: 3, kind: input, shape index: {}]
  %s4 = inlined_call_operand.vmem [shape: f32[1,128], index: 4, kind: input, shape index: {}]
  %s5 = inlined_call_operand.hbm [shape: f32[2,10], index: 5, kind: output, shape index: {}]
  %s6 = sld [smem:[#allocation0]]
  $region42: #{tpu_custom_call.1} parent=0
    _
  %s8 = ssub.s32 1, %s6
  %s9 = scalar_select 0, %s8, %s6
  $region1: #{tpu_custom_call.1} parent=0
    #allocation2 [shape = 'u8[28672]{0}', space=vmem, size = 0x7000, scoped, tag = 'input window, operand 0, single buffered']
    #allocation3 [shape = 's32[1]{0}', space=sflag, size = 0x4, scoped, tag = 'scoped memory for tpu_custom_call.1']
    #allocation4 [shape = 's32[1]{0}', space=sflag, size = 0x4, scoped, tag = 'scoped memory for tpu_custom_call.1']
    #allocation5 [shape = 'u8[401408]{0}', space=vmem, size = 0x62000, scoped, tag = 'input window, operand 1, single buffered']
    #allocation6 [shape = 's32[1]{0}', space=sflag, size = 0x4, scoped, tag = 'scoped memory for tpu_custom_call.1']
    #allocation7 [shape = 'u8[65536]{0}', space=vmem, size = 0x10000, scoped, tag = 'input window, operand 3, single buffered']
    #allocation8 [shape = 'u8[4096]{0}', space=vmem, size = 0x1000, scoped, tag = 'output window, operand 0, single buffered']
    %10 = vsyncpa [#allocation3], 0
    %11 = vsyncpa [#allocation6], 0
    %12 = vsyncpa [#allocation4], 0
    // Predicated region
    $region2: #{tpu_custom_call.1} parent=1 // pred_check
      _
    $region3: #{tpu_custom_call.1} parent=1 // pred_check_branch
      %14 = sbr.rel (0) target = $region5
    $region4: #{tpu_custom_call.1} parent=1 // pred_region
      %s16 = ssub.s32 896, 224
      %17 = vsyncadd [#allocation3], %s16
      %s18 = sshll.u32 [#allocation2], 4
      %s19 = int_to_ptr.vmem [resolvable:$true] %s18
      %24 = dma.hbm_to_vmem [thread:$0]  %s0, 224, %s19, [#allocation3], 224, 224, 14
    $region5: #{tpu_custom_call.1} parent=1 // pred_fallthru
      _
    // Predicated region
    $region6: #{tpu_custom_call.1} parent=1 // pred_check
      _
    $region7: #{tpu_custom_call.1} parent=1 // pred_check_branch
      %26 = sbr.rel (0) target = $region9
    $region8: #{tpu_custom_call.1} parent=1 // pred_region
      %s28 = ssub.s32 12544, 12544
      %29 = vsyncadd [#allocation6], %s28
      %s30 = sshll.u32 [#allocation5], 4
      %s31 = int_to_ptr.vmem [resolvable:$true] %s30
      %36 = dma.hbm_to_vmem [thread:$0]  %s1, 12544, %s31, [#allocation6], 128, 128, 8
    $region9: #{tpu_custom_call.1} parent=1 // pred_fallthru
      _
    // Predicated region
    $region10: #{tpu_custom_call.1} parent=1 // pred_check
      _
    $region11: #{tpu_custom_call.1} parent=1 // pred_check_branch
      %38 = sbr.rel (0) target = $region13
    $region12: #{tpu_custom_call.1} parent=1 // pred_region
      _
    $region13: #{tpu_custom_call.1} parent=1 // pred_fallthru
      _
    // Predicated region
    $region14: #{tpu_custom_call.1} parent=1 // pred_check
      _
    $region15: #{tpu_custom_call.1} parent=1 // pred_check_branch
      %40 = sbr.rel (0) target = $region17
    $region16: #{tpu_custom_call.1} parent=1 // pred_region
      %s42 = ssub.s32 2048, 2048
      %43 = vsyncadd [#allocation6], %s42
      %s44 = sshll.u32 [#allocation7], 4
      %s45 = int_to_ptr.vmem [resolvable:$true] %s44
      %50 = dma.hbm_to_vmem [thread:$0]  %s3, 2048, %s45, [#allocation6], 128, 128, 8
    $region17: #{tpu_custom_call.1} parent=1 // pred_fallthru
      _
    // Predicated region
    $region18: #{tpu_custom_call.1} parent=1 // pred_check
      _
    $region19: #{tpu_custom_call.1} parent=1 // pred_check_branch
      %52 = sbr.rel (0) target = $region21
    $region20: #{tpu_custom_call.1} parent=1 // pred_region
      _
    $region21: #{tpu_custom_call.1} parent=1 // pred_fallthru
      _
    // Predicated region
    $region22: #{tpu_custom_call.1} parent=1 // pred_check
      _
    $region23: #{tpu_custom_call.1} parent=1 // pred_check_branch
      %54 = sbr.rel (0) target = $region25
    $region24: #{tpu_custom_call.1} parent=1 // pred_region
      %55 = dma.done [#allocation3], 896
    $region25: #{tpu_custom_call.1} parent=1 // pred_fallthru
      _
    // Predicated region
    $region26: #{tpu_custom_call.1} parent=1 // pred_check
      _
    $region27: #{tpu_custom_call.1} parent=1 // pred_check_branch
      %57 = sbr.rel (0) target = $region29
    $region28: #{tpu_custom_call.1} parent=1 // pred_region
      %58 = dma.done [#allocation6], 12544
    $region29: #{tpu_custom_call.1} parent=1 // pred_fallthru
      _
    // Predicated region
    $region30: #{tpu_custom_call.1} parent=1 // pred_check
      _
    $region31: #{tpu_custom_call.1} parent=1 // pred_check_branch
      %60 = sbr.rel (0) target = $region33
    $region32: #{tpu_custom_call.1} parent=1 // pred_region
      %61 = dma.done [#allocation6], 2048
    $region33: #{tpu_custom_call.1} parent=1 // pred_fallthru
      _
    %v62 = vld [vmem:[#allocation2] sm:$0xff]
    %v63 = vld [vmem:[#allocation2 + $0x8] sm:$0x3f]
    %v64 = vld [vmem:[#allocation2 + $0xe] sm:$0xff]
    %v65 = vld [vmem:[#allocation2 + $0x16] sm:$0x3f]
    %v66 = vld [vmem:[#allocation2 + $0x1c] sm:$0xff]
    %v67 = vld [vmem:[#allocation2 + $0x24] sm:$0x3f]
    %v68 = vld [vmem:[#allocation2 + $0x2a] sm:$0xff]
    %v69 = vld [vmem:[#allocation2 + $0x32] sm:$0x3f]
    %v70 = vld [vmem:[#allocation5] sm:$0xff]
    %v71 = vld [vmem:[#allocation5 + $0x8] sm:$0xff]
    %v72 = vld [vmem:[#allocation5 + $0x10] sm:$0xff]
    %v73 = vld [vmem:[#allocation5 + $0x18] sm:$0xff]
    %v74 = vld [vmem:[#allocation5 + $0x20] sm:$0xff]
    %v75 = vld [vmem:[#allocation5 + $0x28] sm:$0xff]
    %v76 = vld [vmem:[#allocation5 + $0x30] sm:$0xff]
    %v77 = vld [vmem:[#allocation5 + $0x38] sm:$0xff]
    %v78 = vld [vmem:[#allocation5 + $0x40] sm:$0xff]
    %v79 = vld [vmem:[#allocation5 + $0x48] sm:$0xff]
    %v80 = vld [vmem:[#allocation5 + $0x50] sm:$0xff]
    %v81 = vld [vmem:[#allocation5 + $0x58] sm:$0xff]
    %v82 = vld [vmem:[#allocation5 + $0x60] sm:$0xff]
    %v83 = vld [vmem:[#allocation5 + $0x68] sm:$0xff]
    %v84 = vld [vmem:[#allocation5 + $0x70] sm:$0xff]
    %v85 = vld [vmem:[#allocation5 + $0x78] sm:$0xff]
    %v86 = vld [vmem:[#allocation5 + $0x80] sm:$0xff]
    %v87 = vld [vmem:[#allocation5 + $0x88] sm:$0xff]
    %v88 = vld [vmem:[#allocation5 + $0x90] sm:$0xff]
    %v89 = vld [vmem:[#allocation5 + $0x98] sm:$0xff]
    %v90 = vld [vmem:[#allocation5 + $0xa0] sm:$0xff]
    %v91 = vld [vmem:[#allocation5 + $0xa8] sm:$0xff]
    %v92 = vld [vmem:[#allocation5 + $0xb0] sm:$0xff]
    %v93 = vld [vmem:[#allocation5 + $0xb8] sm:$0xff]
    %v94 = vld [vmem:[#allocation5 + $0xc0] sm:$0xff]
    %v95 = vld [vmem:[#allocation5 + $0xc8] sm:$0xff]
    %v96 = vld [vmem:[#allocation5 + $0xd0] sm:$0xff]
    %v97 = vld [vmem:[#allocation5 + $0xd8] sm:$0xff]
    %v98 = vld [vmem:[#allocation5 + $0xe0] sm:$0xff]
    %v99 = vld [vmem:[#allocation5 + $0xe8] sm:$0xff]
    %v100 = vld [vmem:[#allocation5 + $0xf0] sm:$0xff]
    %v101 = vld [vmem:[#allocation5 + $0xf8] sm:$0xff]
    %v102 = vld [vmem:[#allocation5 + $0x100] sm:$0xff]
    %v103 = vld [vmem:[#allocation5 + $0x108] sm:$0xff]
    %v104 = vld [vmem:[#allocation5 + $0x110] sm:$0xff]
    %v105 = vld [vmem:[#allocation5 + $0x118] sm:$0xff]
    %v106 = vld [vmem:[#allocation5 + $0x120] sm:$0xff]
    %v107 = vld [vmem:[#allocation5 + $0x128] sm:$0xff]
    %v108 = vld [vmem:[#allocation5 + $0x130] sm:$0xff]
    %v109 = vld [vmem:[#allocation5 + $0x138] sm:$0xff]
    %v110 = vld [vmem:[#allocation5 + $0x140] sm:$0xff]
    %v111 = vld [vmem:[#allocation5 + $0x148] sm:$0xff]
    %v112 = vld [vmem:[#allocation5 + $0x150] sm:$0xff]
    %v113 = vld [vmem:[#allocation5 + $0x158] sm:$0xff]
    %v114 = vld [vmem:[#allocation5 + $0x160] sm:$0xff]
    %v115 = vld [vmem:[#allocation5 + $0x168] sm:$0xff]
    %v116 = vld [vmem:[#allocation5 + $0x170] sm:$0xff]
    %v117 = vld [vmem:[#allocation5 + $0x178] sm:$0xff]
    %v118 = vld [vmem:[#allocation5 + $0x180] sm:$0xff]
    %v119 = vld [vmem:[#allocation5 + $0x188] sm:$0xff]
    %v120 = vld [vmem:[#allocation5 + $0x190] sm:$0xff]
    %v121 = vld [vmem:[#allocation5 + $0x198] sm:$0xff]
    %v122 = vld [vmem:[#allocation5 + $0x1a0] sm:$0xff]
    %v123 = vld [vmem:[#allocation5 + $0x1a8] sm:$0xff]
    %v124 = vld [vmem:[#allocation5 + $0x1b0] sm:$0xff]
    %v125 = vld [vmem:[#allocation5 + $0x1b8] sm:$0xff]
    %v126 = vld [vmem:[#allocation5 + $0x1c0] sm:$0xff]
    %v127 = vld [vmem:[#allocation5 + $0x1c8] sm:$0xff]
    %v128 = vld [vmem:[#allocation5 + $0x1d0] sm:$0xff]
    %v129 = vld [vmem:[#allocation5 + $0x1d8] sm:$0xff]
    %v130 = vld [vmem:[#allocation5 + $0x1e0] sm:$0xff]
    %v131 = vld [vmem:[#allocation5 + $0x1e8] sm:$0xff]
    %v132 = vld [vmem:[#allocation5 + $0x1f0] sm:$0xff]
    %v133 = vld [vmem:[#allocation5 + $0x1f8] sm:$0xff]
    %v134 = vld [vmem:[#allocation5 + $0x200] sm:$0xff]
    %v135 = vld [vmem:[#allocation5 + $0x208] sm:$0xff]
    %v136 = vld [vmem:[#allocation5 + $0x210] sm:$0xff]
    %v137 = vld [vmem:[#allocation5 + $0x218] sm:$0xff]
    %v138 = vld [vmem:[#allocation5 + $0x220] sm:$0xff]
    %v139 = vld [vmem:[#allocation5 + $0x228] sm:$0xff]
    %v140 = vld [vmem:[#allocation5 + $0x230] sm:$0xff]
    %v141 = vld [vmem:[#allocation5 + $0x238] sm:$0xff]
    %v142 = vld [vmem:[#allocation5 + $0x240] sm:$0xff]
    %v143 = vld [vmem:[#allocation5 + $0x248] sm:$0xff]
    %v144 = vld [vmem:[#allocation5 + $0x250] sm:$0xff]
    %v145 = vld [vmem:[#allocation5 + $0x258] sm:$0xff]
    %v146 = vld [vmem:[#allocation5 + $0x260] sm:$0xff]
    %v147 = vld [vmem:[#allocation5 + $0x268] sm:$0xff]
    %v148 = vld [vmem:[#allocation5 + $0x270] sm:$0xff]
    %v149 = vld [vmem:[#allocation5 + $0x278] sm:$0xff]
    %v150 = vld [vmem:[#allocation5 + $0x280] sm:$0xff]
    %v151 = vld [vmem:[#allocation5 + $0x288] sm:$0xff]
    %v152 = vld [vmem:[#allocation5 + $0x290] sm:$0xff]
    %v153 = vld [vmem:[#allocation5 + $0x298] sm:$0xff]
    %v154 = vld [vmem:[#allocation5 + $0x2a0] sm:$0xff]
    %v155 = vld [vmem:[#allocation5 + $0x2a8] sm:$0xff]
    %v156 = vld [vmem:[#allocation5 + $0x2b0] sm:$0xff]
    %v157 = vld [vmem:[#allocation5 + $0x2b8] sm:$0xff]
    %v158 = vld [vmem:[#allocation5 + $0x2c0] sm:$0xff]
    %v159 = vld [vmem:[#allocation5 + $0x2c8] sm:$0xff]
    %v160 = vld [vmem:[#allocation5 + $0x2d0] sm:$0xff]
    %v161 = vld [vmem:[#allocation5 + $0x2d8] sm:$0xff]
    %v162 = vld [vmem:[#allocation5 + $0x2e0] sm:$0xff]
    %v163 = vld [vmem:[#allocation5 + $0x2e8] sm:$0xff]
    %v164 = vld [vmem:[#allocation5 + $0x2f0] sm:$0xff]
    %v165 = vld [vmem:[#allocation5 + $0x2f8] sm:$0xff]
    %v166 = vld [vmem:[#allocation5 + $0x300] sm:$0xff]
    %v167 = vld [vmem:[#allocation5 + $0x308] sm:$0xff]
    %v168 = vld [vmem:[%s2] sm:$0x1]
    %v170 = vlaneseq
    %v171 = vshrl.u32 %v170, 7
    %v172 = vsub.s32 0, %v171
    %v173 = vrot.slane %v168, %v172
    %v183 = vcombine.low %v62, %v64
    %v184 = vcombine.high %v62, %v64
    %v185 = vcombine.low %v66, %v68
    %v186 = vcombine.high %v66, %v68
    %v188 = vunpack.c.l.s4 1983009808
    %v189 = vunpack.c.0.s8 %v188
    %v190 = vlaneseq
    %v191 = vshrl.u32 %v190, 7
    %v192 = vsub.s32 %v189, %v191
    %v193 = vrot.slane %v183, %v192
    %v195 = vunpack.c.l.s4 1983009808
    %v196 = vunpack.c.0.s8 %v195
    %v197 = vlaneseq
    %v198 = vshrl.u32 %v197, 7
    %v199 = vsub.s32 %v196, %v198
    %v200 = vrot.slane %v184, %v199
    %v202 = vunpack.c.l.s4 1983009808
    %v203 = vunpack.c.0.s8 %v202
    %v204 = vlaneseq
    %v205 = vshrl.u32 %v204, 7
    %v206 = vsub.s32 %v203, %v205
    %v207 = vrot.slane %v185, %v206
    %v209 = vunpack.c.l.s4 1983009808
    %v210 = vunpack.c.0.s8 %v209
    %v211 = vlaneseq
    %v212 = vshrl.u32 %v211, 7
    %v213 = vsub.s32 %v210, %v212
    %v214 = vrot.slane %v186, %v213
    %v215 = vcombine.low %v193, %v207
    %v216 = vcombine.high %v193, %v207
    %v217 = vcombine.low %v200, %v214
    %v218 = vcombine.high %v200, %v214
    %v219 = vcombine.low %v63, %v65
    %v220 = vcombine.high %v63, %v65
    %v221 = vcombine.low %v67, %v69
    %v222 = vcombine.high %v67, %v69
    %v224 = vunpack.c.l.s4 1983009808
    %v225 = vunpack.c.0.s8 %v224
    %v226 = vlaneseq
    %v227 = vshrl.u32 %v226, 7
    %v228 = vsub.s32 %v225, %v227
    %v229 = vrot.slane %v219, %v228
    %v231 = vunpack.c.l.s4 1983009808
    %v232 = vunpack.c.0.s8 %v231
    %v233 = vlaneseq
    %v234 = vshrl.u32 %v233, 7
    %v235 = vsub.s32 %v232, %v234
    %v236 = vrot.slane %v220, %v235
    %v238 = vunpack.c.l.s4 1983009808
    %v239 = vunpack.c.0.s8 %v238
    %v240 = vlaneseq
    %v241 = vshrl.u32 %v240, 7
    %v242 = vsub.s32 %v239, %v241
    %v243 = vrot.slane %v221, %v242
    %v245 = vunpack.c.l.s4 1983009808
    %v246 = vunpack.c.0.s8 %v245
    %v247 = vlaneseq
    %v248 = vshrl.u32 %v247, 7
    %v249 = vsub.s32 %v246, %v248
    %v250 = vrot.slane %v222, %v249
    %v251 = vcombine.low %v229, %v243
    %v252 = vcombine.high %v229, %v243
    %v253 = vcombine.low %v236, %v250
    %vm260 = vcmask 130048
    %v261 = vsel %vm260, %v253, 0
    %263 = vmatprep.subr.mxu0 0.0
    %264 = vmatpush1.msra.mxu0 %v85
    %265 = vmatprep.subr.mxu0 0.0
    %266 = vmatpush1.msra.mxu0 %v84
    %267 = vmatprep.subr.mxu0 0.0
    %268 = vmatpush1.msra.mxu0 %v83
    %269 = vmatprep.subr.mxu0 0.0
    %270 = vmatpush1.msra.mxu0 %v82
    %271 = vmatprep.subr.mxu0 0.0
    %272 = vmatpush1.msra.mxu0 %v81
    %273 = vmatprep.subr.mxu0 0.0
    %274 = vmatpush1.msra.mxu0 %v80
    %275 = vmatprep.subr.mxu0 0.0
    %276 = vmatpush1.msra.mxu0 %v79
    %277 = vmatprep.subr.mxu0 0.0
    %278 = vmatpush1.msra.mxu0 %v78
    %279 = vmatprep.subr.mxu0 0.0
    %280 = vmatpush1.msra.mxu0 %v77
    %281 = vmatprep.subr.mxu0 0.0
    %282 = vmatpush1.msra.mxu0 %v76
    %283 = vmatprep.subr.mxu0 0.0
    %284 = vmatpush1.msra.mxu0 %v75
    %285 = vmatprep.subr.mxu0 0.0
    %286 = vmatpush1.msra.mxu0 %v74
    %287 = vmatprep.subr.mxu0 0.0
    %288 = vmatpush1.msra.mxu0 %v73
    %289 = vmatprep.subr.mxu0 0.0
    %290 = vmatpush1.msra.mxu0 %v72
    %291 = vmatprep.subr.mxu0 0.0
    %292 = vmatpush1.msra.mxu0 %v71
    %293 = vmatprep.subr.mxu0 0.0
    %294 = vmatpush1.msra.mxu0 %v70
    %295 = vmatprep.subr.mxu0 0.0
    %296 = vmatpush2.msra.mxu0 %v101
    %297 = vmatprep.subr.mxu0 0.0
    %298 = vmatpush2.msra.mxu0 %v100
    %299 = vmatprep.subr.mxu0 0.0
    %300 = vmatpush2.msra.mxu0 %v99
    %301 = vmatprep.subr.mxu0 0.0
    %302 = vmatpush2.msra.mxu0 %v98
    %303 = vmatprep.subr.mxu0 0.0
    %304 = vmatpush2.msra.mxu0 %v97
    %305 = vmatprep.subr.mxu0 0.0
    %306 = vmatpush2.msra.mxu0 %v96
    %307 = vmatprep.subr.mxu0 0.0
    %308 = vmatpush2.msra.mxu0 %v95
    %309 = vmatprep.subr.mxu0 0.0
    %310 = vmatpush2.msra.mxu0 %v94
    %311 = vmatprep.subr.mxu0 0.0
    %312 = vmatpush2.msra.mxu0 %v93
    %313 = vmatprep.subr.mxu0 0.0
    %314 = vmatpush2.msra.mxu0 %v92
    %315 = vmatprep.subr.mxu0 0.0
    %316 = vmatpush2.msra.mxu0 %v91
    %317 = vmatprep.subr.mxu0 0.0
    %318 = vmatpush2.msra.mxu0 %v90
    %319 = vmatprep.subr.mxu0 0.0
    %320 = vmatpush2.msra.mxu0 %v89
    %321 = vmatprep.subr.mxu0 0.0
    %322 = vmatpush2.msra.mxu0 %v88
    %323 = vmatprep.subr.mxu0 0.0
    %324 = vmatpush2.msra.mxu0 %v87
    %325 = vmatprep.subr.mxu0 0.0
    %326 = vmatpush2.msra.mxu0 %v86
    %327 = vmatprep.mubr.f32.mxu0 %v216
    %328 = vmatmul.mubr.f32.gmra.mxu0 %v215
    %v329 = vpop.f32.mrf.mxu0
    %v330 = vadd.f32 %v173, %v329
    %v331 = vpop.f32.mrf.mxu0
    %332 = vdwg.mxu0
    %333 = vmatprep.subr.mxu0 0.0
    %334 = vmatpush1.msra.mxu0 %v117
    %335 = vmatprep.subr.mxu0 0.0
    %336 = vmatpush1.msra.mxu0 %v116
    %337 = vmatprep.subr.mxu0 0.0
    %338 = vmatpush1.msra.mxu0 %v115
    %339 = vmatprep.subr.mxu0 0.0
    %340 = vmatpush1.msra.mxu0 %v114
    %341 = vmatprep.subr.mxu0 0.0
    %342 = vmatpush1.msra.mxu0 %v113
    %343 = vmatprep.subr.mxu0 0.0
    %344 = vmatpush1.msra.mxu0 %v112
    %345 = vmatprep.subr.mxu0 0.0
    %346 = vmatpush1.msra.mxu0 %v111
    %347 = vmatprep.subr.mxu0 0.0
    %348 = vmatpush1.msra.mxu0 %v110
    %349 = vmatprep.subr.mxu0 0.0
    %350 = vmatpush1.msra.mxu0 %v109
    %351 = vmatprep.subr.mxu0 0.0
    %352 = vmatpush1.msra.mxu0 %v108
    %353 = vmatprep.subr.mxu0 0.0
    %354 = vmatpush1.msra.mxu0 %v107
    %355 = vmatprep.subr.mxu0 0.0
    %356 = vmatpush1.msra.mxu0 %v106
    %357 = vmatprep.subr.mxu0 0.0
    %358 = vmatpush1.msra.mxu0 %v105
    %359 = vmatprep.subr.mxu0 0.0
    %360 = vmatpush1.msra.mxu0 %v104
    %361 = vmatprep.subr.mxu0 0.0
    %362 = vmatpush1.msra.mxu0 %v103
    %363 = vmatprep.subr.mxu0 0.0
    %364 = vmatpush1.msra.mxu0 %v102
    %365 = vmatprep.subr.mxu0 0.0
    %366 = vmatpush2.msra.mxu0 %v133
    %367 = vmatprep.subr.mxu0 0.0
    %368 = vmatpush2.msra.mxu0 %v132
    %369 = vmatprep.subr.mxu0 0.0
    %370 = vmatpush2.msra.mxu0 %v131
    %371 = vmatprep.subr.mxu0 0.0
    %372 = vmatpush2.msra.mxu0 %v130
    %373 = vmatprep.subr.mxu0 0.0
    %374 = vmatpush2.msra.mxu0 %v129
    %375 = vmatprep.subr.mxu0 0.0
    %376 = vmatpush2.msra.mxu0 %v128
    %377 = vmatprep.subr.mxu0 0.0
    %378 = vmatpush2.msra.mxu0 %v127
    %379 = vmatprep.subr.mxu0 0.0
    %380 = vmatpush2.msra.mxu0 %v126
    %381 = vmatprep.subr.mxu0 0.0
    %382 = vmatpush2.msra.mxu0 %v125
    %383 = vmatprep.subr.mxu0 0.0
    %384 = vmatpush2.msra.mxu0 %v124
    %385 = vmatprep.subr.mxu0 0.0
    %386 = vmatpush2.msra.mxu0 %v123
    %387 = vmatprep.subr.mxu0 0.0
    %388 = vmatpush2.msra.mxu0 %v122
    %389 = vmatprep.subr.mxu0 0.0
    %390 = vmatpush2.msra.mxu0 %v121
    %391 = vmatprep.subr.mxu0 0.0
    %392 = vmatpush2.msra.mxu0 %v120
    %393 = vmatprep.subr.mxu0 0.0
    %394 = vmatpush2.msra.mxu0 %v119
    %395 = vmatprep.subr.mxu0 0.0
    %396 = vmatpush2.msra.mxu0 %v118
    %397 = vmatprep.mubr.f32.mxu0 %v218
    %398 = vmatmul.mubr.f32.gmra.mxu0 %v217
    %v399 = vpop.f32.mrf.mxu0
    %v400 = vadd.f32 %v330, %v399
    %v401 = vpop.f32.mrf.mxu0
    %402 = vdwg.mxu0
    %403 = vmatprep.subr.mxu0 0.0
    %404 = vmatpush1.msra.mxu0 %v149
    %405 = vmatprep.subr.mxu0 0.0
    %406 = vmatpush1.msra.mxu0 %v148
    %407 = vmatprep.subr.mxu0 0.0
    %408 = vmatpush1.msra.mxu0 %v147
    %409 = vmatprep.subr.mxu0 0.0
    %410 = vmatpush1.msra.mxu0 %v146
    %411 = vmatprep.subr.mxu0 0.0
    %412 = vmatpush1.msra.mxu0 %v145
    %413 = vmatprep.subr.mxu0 0.0
    %414 = vmatpush1.msra.mxu0 %v144
    %415 = vmatprep.subr.mxu0 0.0
    %416 = vmatpush1.msra.mxu0 %v143
    %417 = vmatprep.subr.mxu0 0.0
    %418 = vmatpush1.msra.mxu0 %v142
    %419 = vmatprep.subr.mxu0 0.0
    %420 = vmatpush1.msra.mxu0 %v141
    %421 = vmatprep.subr.mxu0 0.0
    %422 = vmatpush1.msra.mxu0 %v140
    %423 = vmatprep.subr.mxu0 0.0
    %424 = vmatpush1.msra.mxu0 %v139
    %425 = vmatprep.subr.mxu0 0.0
    %426 = vmatpush1.msra.mxu0 %v138
    %427 = vmatprep.subr.mxu0 0.0
    %428 = vmatpush1.msra.mxu0 %v137
    %429 = vmatprep.subr.mxu0 0.0
    %430 = vmatpush1.msra.mxu0 %v136
    %431 = vmatprep.subr.mxu0 0.0
    %432 = vmatpush1.msra.mxu0 %v135
    %433 = vmatprep.subr.mxu0 0.0
    %434 = vmatpush1.msra.mxu0 %v134
    %435 = vmatprep.subr.mxu0 0.0
    %436 = vmatpush2.msra.mxu0 %v165
    %437 = vmatprep.subr.mxu0 0.0
    %438 = vmatpush2.msra.mxu0 %v164
    %439 = vmatprep.subr.mxu0 0.0
    %440 = vmatpush2.msra.mxu0 %v163
    %441 = vmatprep.subr.mxu0 0.0
    %442 = vmatpush2.msra.mxu0 %v162
    %443 = vmatprep.subr.mxu0 0.0
    %444 = vmatpush2.msra.mxu0 %v161
    %445 = vmatprep.subr.mxu0 0.0
    %446 = vmatpush2.msra.mxu0 %v160
    %447 = vmatprep.subr.mxu0 0.0
    %448 = vmatpush2.msra.mxu0 %v159
    %449 = vmatprep.subr.mxu0 0.0
    %450 = vmatpush2.msra.mxu0 %v158
    %451 = vmatprep.subr.mxu0 0.0
    %452 = vmatpush2.msra.mxu0 %v157
    %453 = vmatprep.subr.mxu0 0.0
    %454 = vmatpush2.msra.mxu0 %v156
    %455 = vmatprep.subr.mxu0 0.0
    %456 = vmatpush2.msra.mxu0 %v155
    %457 = vmatprep.subr.mxu0 0.0
    %458 = vmatpush2.msra.mxu0 %v154
    %459 = vmatprep.subr.mxu0 0.0
    %460 = vmatpush2.msra.mxu0 %v153
    %461 = vmatprep.subr.mxu0 0.0
    %462 = vmatpush2.msra.mxu0 %v152
    %463 = vmatprep.subr.mxu0 0.0
    %464 = vmatpush2.msra.mxu0 %v151
    %465 = vmatprep.subr.mxu0 0.0
    %466 = vmatpush2.msra.mxu0 %v150
    %467 = vmatprep.mubr.f32.mxu0 %v252
    %468 = vmatmul.mubr.f32.gmra.mxu0 %v251
    %v469 = vpop.f32.mrf.mxu0
    %v470 = vadd.f32 %v400, %v469
    %v471 = vpop.f32.mrf.mxu0
    %472 = vdwg.mxu0
    %473 = vmatprep.subr.mxu0 0.0
    %474 = vmatpush1.msra.mxu0 0.0
    %475 = vmatprep.subr.mxu0 0.0
    %476 = vmatpush1.msra.mxu0 0.0
    %477 = vmatprep.subr.mxu0 0.0
    %478 = vmatpush1.msra.mxu0 0.0
    %479 = vmatprep.subr.mxu0 0.0
    %480 = vmatpush1.msra.mxu0 0.0
    %481 = vmatprep.subr.mxu0 0.0
    %482 = vmatpush1.msra.mxu0 0.0
    %483 = vmatprep.subr.mxu0 0.0
    %484 = vmatpush1.msra.mxu0 0.0
    %485 = vmatprep.subr.mxu0 0.0
    %486 = vmatpush1.msra.mxu0 0.0
    %487 = vmatprep.subr.mxu0 0.0
    %488 = vmatpush1.msra.mxu0 0.0
    %489 = vmatprep.subr.mxu0 0.0
    %490 = vmatpush1.msra.mxu0 0.0
    %491 = vmatprep.subr.mxu0 0.0
    %492 = vmatpush1.msra.mxu0 0.0
    %493 = vmatprep.subr.mxu0 0.0
    %494 = vmatpush1.msra.mxu0 0.0
    %495 = vmatprep.subr.mxu0 0.0
    %496 = vmatpush1.msra.mxu0 0.0
    %497 = vmatprep.subr.mxu0 0.0
    %498 = vmatpush1.msra.mxu0 0.0
    %499 = vmatprep.subr.mxu0 0.0
    %500 = vmatpush1.msra.mxu0 0.0
    %501 = vmatprep.subr.mxu0 0.0
    %502 = vmatpush1.msra.mxu0 %v167
    %503 = vmatprep.subr.mxu0 0.0
    %504 = vmatpush1.msra.mxu0 %v166
    %505 = vmatprep.subr.mxu0 0.0
    %506 = vmatpush2.msra.mxu0 0.0
    %507 = vmatprep.subr.mxu0 0.0
    %508 = vmatpush2.msra.mxu0 0.0
    %509 = vmatprep.subr.mxu0 0.0
    %510 = vmatpush2.msra.mxu0 0.0
    %511 = vmatprep.subr.mxu0 0.0
    %512 = vmatpush2.msra.mxu0 0.0
    %513 = vmatprep.subr.mxu0 0.0
    %514 = vmatpush2.msra.mxu0 0.0
    %515 = vmatprep.subr.mxu0 0.0
    %516 = vmatpush2.msra.mxu0 0.0
    %517 = vmatprep.subr.mxu0 0.0
    %518 = vmatpush2.msra.mxu0 0.0
    %519 = vmatprep.subr.mxu0 0.0
    %520 = vmatpush2.msra.mxu0 0.0
    %521 = vmatprep.subr.mxu0 0.0
    %522 = vmatpush2.msra.mxu0 0.0
    %523 = vmatprep.subr.mxu0 0.0
    %524 = vmatpush2.msra.mxu0 0.0
    %525 = vmatprep.subr.mxu0 0.0
    %526 = vmatpush2.msra.mxu0 0.0
    %527 = vmatprep.subr.mxu0 0.0
    %528 = vmatpush2.msra.mxu0 0.0
    %529 = vmatprep.subr.mxu0 0.0
    %530 = vmatpush2.msra.mxu0 0.0
    %531 = vmatprep.subr.mxu0 0.0
    %532 = vmatpush2.msra.mxu0 0.0
    %533 = vmatprep.subr.mxu0 0.0
    %534 = vmatpush2.msra.mxu0 0.0
    %535 = vmatprep.subr.mxu0 0.0
    %536 = vmatpush2.msra.mxu0 0.0
    %537 = vmatprep.mubr.f32.mxu0 0.0
    %538 = vmatmul.mubr.f32.gmra.mxu0 %v261
    %v539 = vpop.f32.mrf.mxu0
    %v540 = vadd.f32 %v470, %v539
    %v541 = vpop.f32.mrf.mxu0
    %542 = vdwg.mxu0
    %v543 = vxor.u32 %v540, 2147483648
    %v544 = vmul.f32 %v543, 1.442695
    %v545 = vpow.pop %v544
    %v546 = vadd.f32 %v545, 1.0
    %v547 = vrcp.pop %v546
    %v548 = vmul.f32 1.0, %v547
    %v549 = vld [vmem:[#allocation7] sm:$0xff]
    %v550 = vld [vmem:[#allocation7 + $0x8] sm:$0xff]
    %v551 = vld [vmem:[#allocation7 + $0x10] sm:$0xff]
    %v552 = vld [vmem:[#allocation7 + $0x18] sm:$0xff]
    %v553 = vld [vmem:[#allocation7 + $0x20] sm:$0xff]
    %v554 = vld [vmem:[#allocation7 + $0x28] sm:$0xff]
    %v555 = vld [vmem:[#allocation7 + $0x30] sm:$0xff]
    %v556 = vld [vmem:[#allocation7 + $0x38] sm:$0xff]
    %v557 = vld [vmem:[#allocation7 + $0x40] sm:$0xff]
    %v558 = vld [vmem:[#allocation7 + $0x48] sm:$0xff]
    %v559 = vld [vmem:[#allocation7 + $0x50] sm:$0xff]
    %v560 = vld [vmem:[#allocation7 + $0x58] sm:$0xff]
    %v561 = vld [vmem:[#allocation7 + $0x60] sm:$0xff]
    %v562 = vld [vmem:[#allocation7 + $0x68] sm:$0xff]
    %v563 = vld [vmem:[#allocation7 + $0x70] sm:$0xff]
    %v564 = vld [vmem:[#allocation7 + $0x78] sm:$0xff]
    %v565 = vld [vmem:[%s4] sm:$0x1]
    %v567 = vlaneseq
    %v568 = vshrl.u32 %v567, 7
    %v569 = vsub.s32 0, %v568
    %v570 = vrot.slane %v565, %v569
    %572 = vmatprep.subr.mxu0 0.0
    %573 = vmatpush1.msra.mxu0 %v564
    %574 = vmatprep.subr.mxu0 0.0
    %575 = vmatpush1.msra.mxu0 %v563
    %576 = vmatprep.subr.mxu0 0.0
    %577 = vmatpush1.msra.mxu0 %v562
    %578 = vmatprep.subr.mxu0 0.0
    %579 = vmatpush1.msra.mxu0 %v561
    %580 = vmatprep.subr.mxu0 0.0
    %581 = vmatpush1.msra.mxu0 %v560
    %582 = vmatprep.subr.mxu0 0.0
    %583 = vmatpush1.msra.mxu0 %v559
    %584 = vmatprep.subr.mxu0 0.0
    %585 = vmatpush1.msra.mxu0 %v558
    %586 = vmatprep.subr.mxu0 0.0
    %587 = vmatpush1.msra.mxu0 %v557
    %588 = vmatprep.subr.mxu0 0.0
    %589 = vmatpush1.msra.mxu0 %v556
    %590 = vmatprep.subr.mxu0 0.0
    %591 = vmatpush1.msra.mxu0 %v555
    %592 = vmatprep.subr.mxu0 0.0
    %593 = vmatpush1.msra.mxu0 %v554
    %594 = vmatprep.subr.mxu0 0.0
    %595 = vmatpush1.msra.mxu0 %v553
    %596 = vmatprep.subr.mxu0 0.0
    %597 = vmatpush1.msra.mxu0 %v552
    %598 = vmatprep.subr.mxu0 0.0
    %599 = vmatpush1.msra.mxu0 %v551
    %600 = vmatprep.subr.mxu0 0.0
    %601 = vmatpush1.msra.mxu0 %v550
    %602 = vmatprep.subr.mxu0 0.0
    %603 = vmatpush1.msra.mxu0 %v549
    %604 = vmatprep.subr.mxu0 0.0
    %605 = vmatpush2.msra.mxu0 0.0
    %606 = vmatprep.subr.mxu0 0.0
    %607 = vmatpush2.msra.mxu0 0.0
    %608 = vmatprep.subr.mxu0 0.0
    %609 = vmatpush2.msra.mxu0 0.0
    %610 = vmatprep.subr.mxu0 0.0
    %611 = vmatpush2.msra.mxu0 0.0
    %612 = vmatprep.subr.mxu0 0.0
    %613 = vmatpush2.msra.mxu0 0.0
    %614 = vmatprep.subr.mxu0 0.0
    %615 = vmatpush2.msra.mxu0 0.0
    %616 = vmatprep.subr.mxu0 0.0
    %617 = vmatpush2.msra.mxu0 0.0
    %618 = vmatprep.subr.mxu0 0.0
    %619 = vmatpush2.msra.mxu0 0.0
    %620 = vmatprep.subr.mxu0 0.0
    %621 = vmatpush2.msra.mxu0 0.0
    %622 = vmatprep.subr.mxu0 0.0
    %623 = vmatpush2.msra.mxu0 0.0
    %624 = vmatprep.subr.mxu0 0.0
    %625 = vmatpush2.msra.mxu0 0.0
    %626 = vmatprep.subr.mxu0 0.0
    %627 = vmatpush2.msra.mxu0 0.0
    %628 = vmatprep.subr.mxu0 0.0
    %629 = vmatpush2.msra.mxu0 0.0
    %630 = vmatprep.subr.mxu0 0.0
    %631 = vmatpush2.msra.mxu0 0.0
    %632 = vmatprep.subr.mxu0 0.0
    %633 = vmatpush2.msra.mxu0 0.0
    %634 = vmatprep.subr.mxu0 0.0
    %635 = vmatpush2.msra.mxu0 0.0
    %636 = vmatprep.mubr.f32.mxu0 0.0
    %637 = vmatmul.mubr.f32.gmra.mxu0 %v548
    %v638 = vpop.f32.mrf.mxu0
    %v639 = vadd.f32 %v570, %v638
    %v640 = vpop.f32.mrf.mxu0
    %641 = vdwg.mxu0
    %v642 = vxor.u32 %v639, 2147483648
    %v643 = vmul.f32 %v642, 1.442695
    %v644 = vpow.pop %v643
    %v645 = vadd.f32 %v644, 1.0
    %v646 = vrcp.pop %v645
    %v647 = vmul.f32 1.0, %v646
    %vm648 = vcmask 80896
    %649 = vst.msk [vmem:[#allocation8] sm:$0xff] %vm648, %v647
    // Predicated region
    $region34: #{tpu_custom_call.1} parent=1 // pred_check
      _
    $region35: #{tpu_custom_call.1} parent=1 // pred_check_branch
      %651 = sbr.rel (0) target = $region37
    $region36: #{tpu_custom_call.1} parent=1 // pred_region
      %s653 = ssub.s32 128, 32
      %654 = vsyncadd [#allocation4], %s653
      %s655 = sshll.u32 [#allocation8], 4
      %s656 = int_to_ptr.vmem [resolvable:$true] %s655
      %661 = dma.vmem_to_hbm [thread:$0]  %s656, 32, %s5, [#allocation4], 32, 32, 2
    $region37: #{tpu_custom_call.1} parent=1 // pred_fallthru
      _
    // Predicated region
    $region38: #{tpu_custom_call.1} parent=1 // pred_check
      _
    $region39: #{tpu_custom_call.1} parent=1 // pred_check_branch
      %663 = sbr.rel (0) target = $region41
    $region40: #{tpu_custom_call.1} parent=1 // pred_region
      %664 = dma.done [#allocation4], 128
    $region41: #{tpu_custom_call.1} parent=1 // pred_fallthru
      _
    %665 = vsyncpa [#allocation3], 1
    %666 = vsyncpa [#allocation6], 1
    %667 = vsyncpa [#allocation4], 1

</llo_original>
